<compile_context>
chip_gen: v6e
topology: v6e:2x2x1
jax: 0.10.0
libtpu: 0.0.40
codegen_flags: <defaults>
</compile_context>

<pallas_src>
import jax
import jax.numpy as jnp
from jax.experimental import pallas as pl
from jax.experimental.pallas import tpu as pltpu

LANES = 128


def _meanact_kernel(x_ref, o_ref):
    # exp -> EUP slot, clip -> 2 VPU ops; the kernel is pure HBM streaming so
    # compute is never the bottleneck.  Computed in f32 regardless of input
    # dtype (exact parity with the f32 PyTorch reference for f32/bf16 inputs).
    # In the ragged path the final partial block reads out-of-bounds lanes;
    # exp() of that garbage is harmless on TPU (no FP traps) and the
    # corresponding stores are masked by Pallas -- do NOT "fix" with a pad.
    x = x_ref[...].astype(jnp.float32)
    o_ref[...] = jnp.clip(jnp.exp(x), 1e-05, 1e06).astype(o_ref.dtype)


def _default_block_bytes():
    # ~2 MiB blocks: in+out double-buffered = 8 MiB VMEM, inside v5e's 16 MiB
    # scoped default and already near roofline on v6e.  v7x (3.2 TB/s HBM,
    # 32 MiB scoped default) benefits from 4 MiB blocks (16 MiB VMEM total).
    try:
        kind = jax.devices()[0].device_kind.lower()
    except Exception:
        kind = ""
    return (4 << 20) if "v7" in kind else (2 << 20)


def _sublane_multiple(dtype):
    # Sub-32-bit dtypes pack along sublanes: 8 (f32), 16 (bf16/f16), 32 (int8).
    return max(8, 32 // jnp.dtype(dtype).itemsize)


def _run(x_arr, block_shape, index_map, grid, cost):
    return pl.pallas_call(
        _meanact_kernel,
        out_shape=jax.ShapeDtypeStruct(x_arr.shape, x_arr.dtype),
        grid_spec=pltpu.PrefetchScalarGridSpec(
            num_scalar_prefetch=0,
            grid=grid,
            in_specs=[pl.BlockSpec(block_shape, index_map)],
            out_specs=pl.BlockSpec(block_shape, index_map),
        ),
        compiler_params=pltpu.CompilerParams(
            dimension_semantics=("parallel",),
        ),
        cost_estimate=cost,
    )(x_arr)


def mean_act(x, *, block_bytes=None):
    """clamp(exp(x), min=1e-5, max=1e6), elementwise, any shape / float dtype.

    NOTE: for float16 inputs the 1e6 clamp max exceeds fp16 max (65504), so
    large activations saturate to inf after the cast back; use f32/bf16 for
    exact parity with the PyTorch module.
    """
    orig_shape = x.shape
    n = x.size
    if n == 0:
        return x

    itemsize = jnp.dtype(x.dtype).itemsize
    if block_bytes is None:
        block_bytes = _default_block_bytes()
    sublane = _sublane_multiple(x.dtype)
    cost = pl.CostEstimate(flops=2 * n, transcendentals=n,
                           bytes_accessed=2 * n * itemsize)

    # Fast path: view as a lane-dense (rows, width) slab with the widest
    # 128-multiple width dividing n -> only full-width unmasked vld/vst.
    for width in (1024, 512, 256, 128):
        if n % width == 0:
            rows = n // width
            block_rows = max(sublane, block_bytes // (width * itemsize))
            if rows <= block_rows:
                tile_rows = rows                       # full extent, no padding
            else:
                tile_rows = (block_rows // sublane) * sublane
            grid = (pl.cdiv(rows, tile_rows),)
            out2d = _run(x.reshape(rows, width), (tile_rows, width),
                         lambda i: (i, 0), grid, cost)
            return out2d.reshape(orig_shape)

    # Ragged path (n % 128 != 0): run directly on the flat 1-D view.  No
    # host-side pad and no output slice -> HBM traffic stays at ~2n bytes.
    x_flat = x.reshape(-1)
    block_elems = max(block_bytes // itemsize, 8 * LANES)
    if n <= block_elems:
        block = (n,)                                   # full extent: legal block
        grid = (1,)
    else:
        blk = (block_elems // (8 * LANES)) * (8 * LANES)   # lane/sublane aligned
        block = (blk,)
        grid = (pl.cdiv(n, blk),)                      # final block masked
    out1d = _run(x_flat, block, lambda i: (i,), grid, cost)
    return out1d.reshape(orig_shape)


if __name__ == "__main__":
    key = jax.random.PRNGKey(0)
    # MeanAct has no parameters; conv-style feature-map input (batch=2, C=4, 16x16).
    x = jax.random.normal(key, (2, 4, 16, 16), dtype=jnp.float32) * 5.0

    out = jax.block_until_ready(mean_act(x))
    ref = jnp.clip(jnp.exp(x), 1e-05, 1e06)
    assert out.shape == x.shape and out.dtype == x.dtype
    assert jnp.allclose(out, ref, rtol=1e-6, atol=1e-6)

    # Ragged (n % 128 != 0) path: exercises the flat 1-D, no-pad/no-slice route.
    x2 = jax.random.normal(jax.random.PRNGKey(1), (7, 37), dtype=jnp.float32) * 3.0
    out2 = jax.block_until_ready(mean_act(x2))
    ref2 = jnp.clip(jnp.exp(x2), 1e-05, 1e06)
    assert out2.shape == x2.shape
    assert jnp.allclose(out2, ref2, rtol=1e-6, atol=1e-6)

    print("KERNEL_OK")
</pallas_src>

<mosaic_0001>
module attributes {stable_mosaic.version = 11 : i64} {
  func.func @_meanact_kernel(%arg0: i32, %arg1: memref<2x1024xf32, #tpu.memory_space<vmem>>, %arg2: memref<2x1024xf32, #tpu.memory_space<vmem>>) attributes {dimension_semantics = [#tpu.dimension_semantics<parallel>], iteration_bounds = array<i64: 1>, scalar_prefetch = 0 : i64, scratch_operands = 0 : i64, tpu.core_type = #tpu.core_type<tc>, window_params = [{transform_indices = @transform_0, window_bounds = array<i64: 2, 1024>}, {transform_indices = @transform_1, window_bounds = array<i64: 2, 1024>}]} {
    %c0 = arith.constant 0 : index
    %c0_0 = arith.constant 0 : index
    %0 = vector.load %arg1[%c0, %c0_0] : memref<2x1024xf32, #tpu.memory_space<vmem>>, vector<2x1024xf32>
    %1 = math.exp %0 : vector<2x1024xf32>
    %cst = arith.constant 9.99999974E-6 : f32
    %cst_1 = arith.constant 1.000000e+06 : f32
    %2 = vector.broadcast %cst : f32 to vector<2x1024xf32>
    %3 = arith.maximumf %2, %1 : vector<2x1024xf32>
    %4 = vector.broadcast %cst_1 : f32 to vector<2x1024xf32>
    %5 = arith.minimumf %4, %3 : vector<2x1024xf32>
    %c0_2 = arith.constant 0 : index
    %c0_3 = arith.constant 0 : index
    %6 = vector.load %arg2[%c0_2, %c0_3] : memref<2x1024xf32, #tpu.memory_space<vmem>>, vector<2x1024xf32>
    tpu.vector_store %arg2[%c0_2, %c0_3], %5 {strides = array<i32>} : memref<2x1024xf32, #tpu.memory_space<vmem>>, vector<2x1024xf32>,
    return
  }
  func.func @transform_0(%arg0: i32) -> (i32, i32) {
    %c0_i32 = arith.constant 0 : i32
    %c0_i32_0 = arith.constant 0 : i32
    return %arg0, %c0_i32 : i32, i32
  }
  func.func @transform_1(%arg0: i32) -> (i32, i32) {
    %c0_i32 = arith.constant 0 : i32
    %c0_i32_0 = arith.constant 0 : i32
    return %arg0, %c0_i32 : i32, i32
  }
}

</mosaic_0001>

<llo_original>
// kernel: tpu_custom_call.1
$region0: #{tpu_custom_call.1}
  #allocation0 [shape = 'u32[]', space=smem, size = 0x4, offset = 0x4, fixed_abs, tag = 'smem constant byte address 0x4 - core index']
  #allocation1 [shape = 'u32[144,128]{1,0:T(1,128)}', space=vmem, size = 0x12000, scoped, tag = 'internal scratch']
  %s0 = inlined_call_operand.hbm [shape: f32[2,1024], index: 0, kind: input, shape index: {}]
  %s1 = inlined_call_operand.hbm [shape: f32[2,1024], index: 1, kind: output, shape index: {}]
  %s2 = sld [smem:[#allocation0]]
  $region18: #{tpu_custom_call.1} parent=0
    _
  %s4 = ssub.s32 1, %s2
  %s5 = scalar_select 0, %s4, %s2
  $region1: #{tpu_custom_call.1} parent=0
    #allocation2 [shape = 'u8[8192]{0}', space=vmem, size = 0x2000, scoped, tag = 'input window, operand 0, single buffered']
    #allocation3 [shape = 's32[1]{0}', space=sflag, size = 0x4, scoped, tag = 'scoped memory for tpu_custom_call.1']
    #allocation4 [shape = 's32[1]{0}', space=sflag, size = 0x4, scoped, tag = 'scoped memory for tpu_custom_call.1']
    #allocation5 [shape = 'u8[8192]{0}', space=vmem, size = 0x2000, scoped, tag = 'output window, operand 0, single buffered']
    %6 = vsyncpa [#allocation3], 0
    %7 = vsyncpa [#allocation4], 0
    // Predicated region
    $region2: #{tpu_custom_call.1} parent=1 // pred_check
      _
    $region3: #{tpu_custom_call.1} parent=1 // pred_check_branch
      %9 = sbr.rel (0) target = $region5
    $region4: #{tpu_custom_call.1} parent=1 // pred_region
      %s11 = ssub.s32 256, 256
      %12 = vsyncadd [#allocation3], %s11
      %s14 = sshll.u32 [#allocation2], 4
      %s15 = int_to_ptr.vmem [resolvable:$true] %s14
      %17 = dma.hbm_to_vmem [thread:$0]  %s0, 256, %s15, [#allocation3]
    $region5: #{tpu_custom_call.1} parent=1 // pred_fallthru
      _
    // Predicated region
    $region6: #{tpu_custom_call.1} parent=1 // pred_check
      _
    $region7: #{tpu_custom_call.1} parent=1 // pred_check_branch
      %19 = sbr.rel (0) target = $region9
    $region8: #{tpu_custom_call.1} parent=1 // pred_region
      %20 = dma.done [#allocation3], 256
    $region9: #{tpu_custom_call.1} parent=1 // pred_fallthru
      _
    %v21 = vld [vmem:[#allocation2] sm:$0xff]
    %v22 = vld [vmem:[#allocation2 + $0x8] sm:$0xff]
    %v23 = vmul.f32 %v21, 1.442695
    %v24 = vpow.pop %v23
    %v25 = vmul.f32 %v22, 1.442695
    %v26 = vpow.pop %v25
    %v27 = vmax.f32 %v24, 1e-05
    %v28 = vmax.f32 %v26, 1e-05
    %v29 = vmin.f32 %v27, 1000000.0
    %v30 = vmin.f32 %v28, 1000000.0
    %31 = vst [vmem:[#allocation5] sm:$0xff] %v29
    %32 = vst [vmem:[#allocation5 + $0x8] sm:$0xff] %v30
    // Predicated region
    $region10: #{tpu_custom_call.1} parent=1 // pred_check
      _
    $region11: #{tpu_custom_call.1} parent=1 // pred_check_branch
      %34 = sbr.rel (0) target = $region13
    $region12: #{tpu_custom_call.1} parent=1 // pred_region
      %s36 = ssub.s32 256, 256
      %37 = vsyncadd [#allocation4], %s36
      %s39 = sshll.u32 [#allocation5], 4
      %s40 = int_to_ptr.vmem [resolvable:$true] %s39
      %42 = dma.vmem_to_hbm [thread:$0]  %s40, 256, %s1, [#allocation4]
    $region13: #{tpu_custom_call.1} parent=1 // pred_fallthru
      _
    // Predicated region
    $region14: #{tpu_custom_call.1} parent=1 // pred_check
      _
    $region15: #{tpu_custom_call.1} parent=1 // pred_check_branch
      %44 = sbr.rel (0) target = $region17
    $region16: #{tpu_custom_call.1} parent=1 // pred_region
      %45 = dma.done [#allocation4], 256
    $region17: #{tpu_custom_call.1} parent=1 // pred_fallthru
      _
    %46 = vsyncpa [#allocation3], 1
    %47 = vsyncpa [#allocation4], 1

</llo_original>
